<compile_context>
chip_gen: v7x
topology: tpu7x:2x2x1
jax: 0.10.0
libtpu: 0.0.40
codegen_flags: <defaults>
</compile_context>

<pallas_src>
import jax
import jax.numpy as jnp
from jax import lax
from jax.experimental import pallas as pl
from jax.experimental.pallas import tpu as pltpu

OBS_DIM = 8      # LunarLander-v2 observation_space.shape[0]
ACT_DIM = 4      # LunarLander-v2 action_space.n
HIDDEN = 128
OUT_T = 8        # sublane-padded Q rows in the transposed (OUT_T, B) output


def _round_up(x, m):
    return (x + m - 1) // m * m


def qnet_kernel(x_ref, w1_ref, b1_ref, w2_ref, b2_ref, w3t_ref, b3t_ref, qT_ref):
    # x_ref: (tb, OBS_DIM) bf16.  Weights bf16, biases f32.
    # Weights/biases have constant index_maps -> resident in VMEM.
    x = x_ref[...]

    # bf16 MXU operands, f32 accumulation; bias add + ReLU strictly in f32.
    h1 = jnp.dot(x, w1_ref[...], preferred_element_type=jnp.float32) + b1_ref[...]
    h1 = jnp.maximum(h1, 0.0)

    h2 = jnp.dot(h1.astype(jnp.bfloat16), w2_ref[...],
                 preferred_element_type=jnp.float32) + b2_ref[...]
    h2 = jnp.maximum(h2, 0.0)

    # Layer 3 transposed: contract the 128-hidden dim of w3t[OUT_T,128] with
    # h2[tb,128] -> (OUT_T, tb).  Last dim = tb (multiple of 128 on the replay
    # path) so the final store is lane-dense / unmasked.
    qT = lax.dot_general(w3t_ref[...], h2.astype(jnp.bfloat16),
                         dimension_numbers=(((1,), (1,)), ((), ())),
                         preferred_element_type=jnp.float32) + b3t_ref[...]
    qT_ref[...] = qT.astype(qT_ref.dtype)


def qnet_forward(state, params, *, tb=None):
    """state: [B, OBS_DIM] float32 -> Q-values [B, ACT_DIM] float32."""
    w1, b1, w2, b2, w3, b3 = params
    B = state.shape[0]

    # Batch-tile selection.
    if tb is None:
        if B < 256:
            # Online action-selection path: single grid step, pad only to a
            # multiple of 8 sublanes (no 128-row padding for B=2 rollouts).
            tb = _round_up(max(B, 1), 8)
        else:
            # Replay path: multiple of 256 (full MXU M passes on v6e/v7x),
            # sized so the grid has >=2 "parallel" steps (both v7x TCs busy),
            # capped at 2048 rows to bound live VMEM and padding waste.
            tb = min(2048, _round_up(pl.cdiv(_round_up(B, 256), 2), 256))
    Bp = _round_up(B, tb)
    if Bp != B:
        state = jnp.pad(state, ((0, Bp - B), (0, 0)))

    # Transposed, sublane-padded (exact zeros) final layer params.
    w3t = jnp.pad(w3.T, ((0, OUT_T - ACT_DIM), (0, 0)))                   # [8, 128]
    b3t = jnp.pad(b3.reshape(ACT_DIM, 1), ((0, OUT_T - ACT_DIM), (0, 0)))  # [8, 1]

    # bf16 MXU operands (f32 accumulation in-kernel); halves input/weight DMA.
    xb = state.astype(jnp.bfloat16)
    w1b = w1.astype(jnp.bfloat16)
    w2b = w2.astype(jnp.bfloat16)
    w3tb = w3t.astype(jnp.bfloat16)

    const = lambda a: pl.BlockSpec(a.shape, lambda i: (0, 0))

    # Rough live-VMEM estimate (~1.6 KB/row + weights); raise the scoped VMEM
    # limit only when a caller sweeps tb well past the default cap (v5e's
    # default scoped limit is 16 MiB).
    per_row = (2 * OBS_DIM * 2          # bf16 input, double-buffered
               + 2 * HIDDEN * 4         # h1, h2 f32
               + 2 * HIDDEN * 2         # bf16 casts of h1, h2
               + 2 * OUT_T * 4)         # f32 qT output, double-buffered
    weight_bytes = ((OBS_DIM + HIDDEN + OUT_T) * HIDDEN * 2
                    + (2 * HIDDEN + OUT_T) * 4)
    vmem_bytes = tb * per_row + weight_bytes
    cp_kwargs = dict(dimension_semantics=("parallel",))
    if vmem_bytes > 12 * 1024 * 1024:
        cp_kwargs["vmem_limit_bytes"] = int(vmem_bytes * 1.5)

    qT = pl.pallas_call(
        qnet_kernel,
        out_shape=jax.ShapeDtypeStruct((OUT_T, Bp), jnp.float32),
        grid=(Bp // tb,),
        in_specs=[
            pl.BlockSpec((tb, OBS_DIM), lambda i: (i, 0)),  # batch-tiled state
            const(w1b), const(b1),                          # VMEM-resident
            const(w2b), const(b2),
            const(w3tb), const(b3t),
        ],
        out_specs=pl.BlockSpec((OUT_T, tb), lambda i: (0, i)),
        compiler_params=pltpu.CompilerParams(**cp_kwargs),
    )(xb, w1b, b1, w2b, b2, w3tb, b3t)

    # Trivial (ACT_DIM, B) slice + transpose; no padded-f32 HBM re-read pass.
    return qT[:ACT_DIM, :B].T


def init_params(key):
    """Deterministic init mimicking nn.Linear default (U[-1/sqrt(fan_in), +])."""
    def linear(key, fan_in, fan_out):
        kw, kb = jax.random.split(key)
        bound = 1.0 / jnp.sqrt(fan_in)
        w = jax.random.uniform(kw, (fan_in, fan_out), jnp.float32, -bound, bound)
        b = jax.random.uniform(kb, (1, fan_out), jnp.float32, -bound, bound)
        return w, b

    k1, k2, k3 = jax.random.split(key, 3)
    w1, b1 = linear(k1, OBS_DIM, HIDDEN)
    w2, b2 = linear(k2, HIDDEN, HIDDEN)
    w3, b3 = linear(k3, HIDDEN, ACT_DIM)
    return (w1, b1, w2, b2, w3, b3)


def qnet_reference(state, params):
    w1, b1, w2, b2, w3, b3 = params
    h1 = jnp.maximum(state @ w1 + b1, 0.0)
    h2 = jnp.maximum(h1 @ w2 + b2, 0.0)
    return h2 @ w3 + b3


if __name__ == "__main__":
    key = jax.random.PRNGKey(0)
    k_params, k_state = jax.random.split(key)

    params = init_params(k_params)

    # Online action-selection shape (small-batch single-step path).
    batch = 2
    state = jax.random.normal(k_state, (batch, OBS_DIM), jnp.float32)
    q = jax.block_until_ready(qnet_forward(state, params))
    q_ref = qnet_reference(state, params)
    assert q.shape == (batch, ACT_DIM)
    # bf16 matmul operands (f32 accumulation) -> small bounded delta vs f32 ref.
    assert jnp.allclose(q, q_ref, atol=3e-2, rtol=3e-2), (q, q_ref)

    # Replay-sized batch exercising the tiled (>=2 grid steps) path.
    state_big = jax.random.normal(jax.random.PRNGKey(1), (512, OBS_DIM), jnp.float32)
    q_big = jax.block_until_ready(qnet_forward(state_big, params))
    q_big_ref = qnet_reference(state_big, params)
    assert q_big.shape == (512, ACT_DIM)
    assert jnp.allclose(q_big, q_big_ref, atol=3e-2, rtol=3e-2)

    print("KERNEL_OK")
</pallas_src>

<mosaic_0001>
module attributes {stable_mosaic.version = 11 : i64} {
  func.func @qnet_kernel(%arg0: i32, %arg1: memref<8x8xbf16, #tpu.memory_space<vmem>>, %arg2: memref<8x128xbf16, #tpu.memory_space<vmem>>, %arg3: memref<1x128xf32, #tpu.memory_space<vmem>>, %arg4: memref<128x128xbf16, #tpu.memory_space<vmem>>, %arg5: memref<1x128xf32, #tpu.memory_space<vmem>>, %arg6: memref<8x128xbf16, #tpu.memory_space<vmem>>, %arg7: memref<8x1xf32, #tpu.memory_space<vmem>>, %arg8: memref<8x8xf32, #tpu.memory_space<vmem>>) attributes {dimension_semantics = [#tpu.dimension_semantics<parallel>], iteration_bounds = array<i64: 1>, scalar_prefetch = 0 : i64, scratch_operands = 0 : i64, tpu.core_type = #tpu.core_type<tc>, window_params = [{transform_indices = @transform_0, window_bounds = array<i64: 8, 8>}, {pipeline_mode = #tpu.pipeline_mode<synchronous>, transform_indices = @transform_1, window_bounds = array<i64: 8, 128>}, {pipeline_mode = #tpu.pipeline_mode<synchronous>, transform_indices = @transform_2, window_bounds = array<i64: 1, 128>}, {pipeline_mode = #tpu.pipeline_mode<synchronous>, transform_indices = @transform_3, window_bounds = array<i64: 128, 128>}, {pipeline_mode = #tpu.pipeline_mode<synchronous>, transform_indices = @transform_4, window_bounds = array<i64: 1, 128>}, {pipeline_mode = #tpu.pipeline_mode<synchronous>, transform_indices = @transform_5, window_bounds = array<i64: 8, 128>}, {pipeline_mode = #tpu.pipeline_mode<synchronous>, transform_indices = @transform_6, window_bounds = array<i64: 8, 1>}, {transform_indices = @transform_7, window_bounds = array<i64: 8, 8>}]} {
    %c0 = arith.constant 0 : index
    %c0_0 = arith.constant 0 : index
    %0 = vector.load %arg1[%c0, %c0_0] : memref<8x8xbf16, #tpu.memory_space<vmem>>, vector<8x8xbf16>
    %c0_1 = arith.constant 0 : index
    %c0_2 = arith.constant 0 : index
    %1 = vector.load %arg2[%c0_1, %c0_2] : memref<8x128xbf16, #tpu.memory_space<vmem>>, vector<8x128xbf16>
    %cst = arith.constant dense<0.000000e+00> : vector<8x128xf32>
    %2 = tpu.matmul %0, %1, %cst {dimension_numbers = #tpu.dot_dimension_numbers<[1], [0], [0], [1], [0, 0, 1, 1], [], []>} : vector<8x8xbf16>, vector<8x128xbf16>, vector<8x128xf32> -> vector<8x128xf32>
    %c0_3 = arith.constant 0 : index
    %c0_4 = arith.constant 0 : index
    %3 = vector.load %arg3[%c0_3, %c0_4] : memref<1x128xf32, #tpu.memory_space<vmem>>, vector<1x128xf32>
    %4 = vector.broadcast %3 : vector<1x128xf32> to vector<8x128xf32>
    %5 = arith.addf %2, %4 : vector<8x128xf32>
    %cst_5 = arith.constant 0.000000e+00 : f32
    %6 = vector.broadcast %cst_5 : f32 to vector<8x128xf32>
    %7 = arith.maximumf %5, %6 : vector<8x128xf32>
    %8 = arith.truncf %7 : vector<8x128xf32> to vector<8x128xbf16>
    %c0_6 = arith.constant 0 : index
    %c0_7 = arith.constant 0 : index
    %9 = vector.load %arg4[%c0_6, %c0_7] : memref<128x128xbf16, #tpu.memory_space<vmem>>, vector<128x128xbf16>
    %cst_8 = arith.constant dense<0.000000e+00> : vector<8x128xf32>
    %10 = tpu.matmul %8, %9, %cst_8 {dimension_numbers = #tpu.dot_dimension_numbers<[1], [0], [0], [1], [0, 0, 1, 1], [], []>} : vector<8x128xbf16>, vector<128x128xbf16>, vector<8x128xf32> -> vector<8x128xf32>
    %c0_9 = arith.constant 0 : index
    %c0_10 = arith.constant 0 : index
    %11 = vector.load %arg5[%c0_9, %c0_10] : memref<1x128xf32, #tpu.memory_space<vmem>>, vector<1x128xf32>
    %12 = vector.broadcast %11 : vector<1x128xf32> to vector<8x128xf32>
    %13 = arith.addf %10, %12 : vector<8x128xf32>
    %cst_11 = arith.constant 0.000000e+00 : f32
    %14 = vector.broadcast %cst_11 : f32 to vector<8x128xf32>
    %15 = arith.maximumf %13, %14 : vector<8x128xf32>
    %c0_12 = arith.constant 0 : index
    %c0_13 = arith.constant 0 : index
    %16 = vector.load %arg6[%c0_12, %c0_13] : memref<8x128xbf16, #tpu.memory_space<vmem>>, vector<8x128xbf16>
    %17 = arith.truncf %15 : vector<8x128xf32> to vector<8x128xbf16>
    %cst_14 = arith.constant dense<0.000000e+00> : vector<8x8xf32>
    %18 = tpu.matmul %16, %17, %cst_14 {dimension_numbers = #tpu.dot_dimension_numbers<[1], [1], [0], [0], [0, 0, 1, 0], [], []>} : vector<8x128xbf16>, vector<8x128xbf16>, vector<8x8xf32> -> vector<8x8xf32>
    %c0_15 = arith.constant 0 : index
    %c0_16 = arith.constant 0 : index
    %19 = vector.load %arg7[%c0_15, %c0_16] : memref<8x1xf32, #tpu.memory_space<vmem>>, vector<8x1xf32>
    %20 = vector.broadcast %19 : vector<8x1xf32> to vector<8x8xf32>
    %21 = arith.addf %18, %20 : vector<8x8xf32>
    %c0_17 = arith.constant 0 : index
    %c0_18 = arith.constant 0 : index
    %22 = vector.load %arg8[%c0_17, %c0_18] : memref<8x8xf32, #tpu.memory_space<vmem>>, vector<8x8xf32>
    tpu.vector_store %arg8[%c0_17, %c0_18], %21 {strides = array<i32>} : memref<8x8xf32, #tpu.memory_space<vmem>>, vector<8x8xf32>,
    return
  }
  func.func @transform_0(%arg0: i32) -> (i32, i32) {
    %c0_i32 = arith.constant 0 : i32
    %c0_i32_0 = arith.constant 0 : i32
    return %arg0, %c0_i32 : i32, i32
  }
  func.func @transform_1(%arg0: i32) -> (i32, i32) {
    %c0_i32 = arith.constant 0 : i32
    %c0_i32_0 = arith.constant 0 : i32
    %c0_i32_1 = arith.constant 0 : i32
    return %c0_i32, %c0_i32_0 : i32, i32
  }
  func.func @transform_2(%arg0: i32) -> (i32, i32) {
    %c0_i32 = arith.constant 0 : i32
    %c0_i32_0 = arith.constant 0 : i32
    %c0_i32_1 = arith.constant 0 : i32
    return %c0_i32, %c0_i32_0 : i32, i32
  }
  func.func @transform_3(%arg0: i32) -> (i32, i32) {
    %c0_i32 = arith.constant 0 : i32
    %c0_i32_0 = arith.constant 0 : i32
    %c0_i32_1 = arith.constant 0 : i32
    return %c0_i32, %c0_i32_0 : i32, i32
  }
  func.func @transform_4(%arg0: i32) -> (i32, i32) {
    %c0_i32 = arith.constant 0 : i32
    %c0_i32_0 = arith.constant 0 : i32
    %c0_i32_1 = arith.constant 0 : i32
    return %c0_i32, %c0_i32_0 : i32, i32
  }
  func.func @transform_5(%arg0: i32) -> (i32, i32) {
    %c0_i32 = arith.constant 0 : i32
    %c0_i32_0 = arith.constant 0 : i32
    %c0_i32_1 = arith.constant 0 : i32
    return %c0_i32, %c0_i32_0 : i32, i32
  }
  func.func @transform_6(%arg0: i32) -> (i32, i32) {
    %c0_i32 = arith.constant 0 : i32
    %c0_i32_0 = arith.constant 0 : i32
    %c0_i32_1 = arith.constant 0 : i32
    return %c0_i32, %c0_i32_0 : i32, i32
  }
  func.func @transform_7(%arg0: i32) -> (i32, i32) {
    %c0_i32 = arith.constant 0 : i32
    %c0_i32_0 = arith.constant 0 : i32
    return %c0_i32, %arg0 : i32, i32
  }
}

</mosaic_0001>

<llo_original>
// kernel: tpu_custom_call.1
$region0: #{tpu_custom_call.1}
  #allocation0 [shape = 'u32[]', space=smem, size = 0x4, offset = 0x4, fixed_abs, tag = 'smem constant byte address 0x4 - core index']
  #allocation1 [shape = 'u32[144,128]{1,0:T(1,128)}', space=vmem, size = 0x12000, scoped, tag = 'internal scratch']
  %s0 = inlined_call_operand.vmem [shape: bf16[8,8], index: 0, kind: input, shape index: {}]
  %s1 = inlined_call_operand.vmem [shape: bf16[8,128], index: 1, kind: input, shape index: {}]
  %s2 = inlined_call_operand.vmem [shape: f32[1,128], index: 2, kind: input, shape index: {}]
  %s3 = inlined_call_operand.hbm [shape: bf16[128,128], index: 3, kind: input, shape index: {}]
  %s4 = inlined_call_operand.vmem [shape: f32[1,128], index: 4, kind: input, shape index: {}]
  %s5 = inlined_call_operand.vmem [shape: bf16[8,128], index: 5, kind: input, shape index: {}]
  %s6 = inlined_call_operand.vmem [shape: f32[8,1], index: 6, kind: input, shape index: {}]
  %s7 = inlined_call_operand.hbm [shape: f32[8,8], index: 7, kind: output, shape index: {}]
  %s8 = sld [smem:[#allocation0]]
  $region42: #{tpu_custom_call.1} parent=0
    _
  %s10 = ssub.s32 1, %s8
  %s11 = scalar_select 0, %s10, %s8
  $region1: #{tpu_custom_call.1} parent=0
    #allocation2 [shape = 'u8[32768]{0}', space=vmem, size = 0x8000, scoped, tag = 'input window, operand 3, single buffered']
    #allocation3 [shape = 's32[1]{0}', space=sflag, size = 0x4, scoped, tag = 'scoped memory for tpu_custom_call.1']
    #allocation4 [shape = 's32[1]{0}', space=sflag, size = 0x4, scoped, tag = 'scoped memory for tpu_custom_call.1']
    #allocation5 [shape = 'u8[4096]{0}', space=vmem, size = 0x1000, scoped, tag = 'output window, operand 0, single buffered']
    %12 = vsyncpa [#allocation3], 0
    %13 = vsyncpa [#allocation4], 0
    // Predicated region
    $region2: #{tpu_custom_call.1} parent=1 // pred_check
      _
    $region3: #{tpu_custom_call.1} parent=1 // pred_check_branch
      %15 = sbr.rel (0) target = $region5
    $region4: #{tpu_custom_call.1} parent=1 // pred_region
      _
    $region5: #{tpu_custom_call.1} parent=1 // pred_fallthru
      _
    // Predicated region
    $region6: #{tpu_custom_call.1} parent=1 // pred_check
      _
    $region7: #{tpu_custom_call.1} parent=1 // pred_check_branch
      %17 = sbr.rel (0) target = $region9
    $region8: #{tpu_custom_call.1} parent=1 // pred_region
      _
    $region9: #{tpu_custom_call.1} parent=1 // pred_fallthru
      _
    // Predicated region
    $region10: #{tpu_custom_call.1} parent=1 // pred_check
      _
    $region11: #{tpu_custom_call.1} parent=1 // pred_check_branch
      %19 = sbr.rel (0) target = $region13
    $region12: #{tpu_custom_call.1} parent=1 // pred_region
      _
    $region13: #{tpu_custom_call.1} parent=1 // pred_fallthru
      _
    // Predicated region
    $region14: #{tpu_custom_call.1} parent=1 // pred_check
      _
    $region15: #{tpu_custom_call.1} parent=1 // pred_check_branch
      %21 = sbr.rel (0) target = $region17
    $region16: #{tpu_custom_call.1} parent=1 // pred_region
      %s23 = ssub.s32 1024, 1024
      %24 = vsyncadd [#allocation3], %s23
      %s25 = sshll.u32 [#allocation2], 4
      %s26 = int_to_ptr.vmem [resolvable:$true] %s25
      %31 = dma.hbm_to_vmem [thread:$0]  %s3, 1024, %s26, [#allocation3], 64, 64, 4
    $region17: #{tpu_custom_call.1} parent=1 // pred_fallthru
      _
    // Predicated region
    $region18: #{tpu_custom_call.1} parent=1 // pred_check
      _
    $region19: #{tpu_custom_call.1} parent=1 // pred_check_branch
      %33 = sbr.rel (0) target = $region21
    $region20: #{tpu_custom_call.1} parent=1 // pred_region
      _
    $region21: #{tpu_custom_call.1} parent=1 // pred_fallthru
      _
    // Predicated region
    $region22: #{tpu_custom_call.1} parent=1 // pred_check
      _
    $region23: #{tpu_custom_call.1} parent=1 // pred_check_branch
      %35 = sbr.rel (0) target = $region25
    $region24: #{tpu_custom_call.1} parent=1 // pred_region
      _
    $region25: #{tpu_custom_call.1} parent=1 // pred_fallthru
      _
    // Predicated region
    $region26: #{tpu_custom_call.1} parent=1 // pred_check
      _
    $region27: #{tpu_custom_call.1} parent=1 // pred_check_branch
      %37 = sbr.rel (0) target = $region29
    $region28: #{tpu_custom_call.1} parent=1 // pred_region
      _
    $region29: #{tpu_custom_call.1} parent=1 // pred_fallthru
      _
    // Predicated region
    $region30: #{tpu_custom_call.1} parent=1 // pred_check
      _
    $region31: #{tpu_custom_call.1} parent=1 // pred_check_branch
      %39 = sbr.rel (0) target = $region33
    $region32: #{tpu_custom_call.1} parent=1 // pred_region
      %40 = dma.done [#allocation3], 1024
    $region33: #{tpu_custom_call.1} parent=1 // pred_fallthru
      _
    %v42 = vld [vmem:[%s0] sm:$0xf]
    %v43 = vld [vmem:[%s1] sm:$0xf]
    %v44 = vld [vmem:[%s2] sm:$0x1]
    %v46 = vlaneseq
    %v47 = vshrl.u32 %v46, 7
    %v48 = vsub.s32 0, %v47
    %v49 = vrot.slane %v44, %v48
    %vm51 = vcmask 64512
    %v53 = vsel %vm51, %v42, 0
    %vm55 = vcmask 1043456
    %v57 = vsel %vm55, %v43, 0
    %59 = vmatprep.subr.bf16.mxu0 0
    %60 = vmatpush1.bf16.msra.mxu0 %v57
    %61 = vmatprep.subr.bf16.mxu0 0
    %62 = vmatpush1.bf16.msra.mxu0 0
    %63 = vmatprep.subr.bf16.mxu0 0
    %64 = vmatpush1.bf16.msra.mxu0 0
    %65 = vmatprep.subr.bf16.mxu0 0
    %66 = vmatpush1.bf16.msra.mxu0 0
    %67 = vmatprep.subr.bf16.mxu0 0
    %68 = vmatpush1.bf16.msra.mxu0 0
    %69 = vmatprep.subr.bf16.mxu0 0
    %70 = vmatpush1.bf16.msra.mxu0 0
    %71 = vmatprep.subr.bf16.mxu0 0
    %72 = vmatpush1.bf16.msra.mxu0 0
    %73 = vmatprep.subr.bf16.mxu0 0
    %74 = vmatpush1.bf16.msra.mxu0 0
    %75 = vmatprep.subr.bf16.mxu0 0
    %76 = vmatpush1.bf16.msra.mxu0 0
    %77 = vmatprep.subr.bf16.mxu0 0
    %78 = vmatpush1.bf16.msra.mxu0 0
    %79 = vmatprep.subr.bf16.mxu0 0
    %80 = vmatpush1.bf16.msra.mxu0 0
    %81 = vmatprep.subr.bf16.mxu0 0
    %82 = vmatpush1.bf16.msra.mxu0 0
    %83 = vmatprep.subr.bf16.mxu0 0
    %84 = vmatpush1.bf16.msra.mxu0 0
    %85 = vmatprep.subr.bf16.mxu0 0
    %86 = vmatpush1.bf16.msra.mxu0 0
    %87 = vmatprep.subr.bf16.mxu0 0
    %88 = vmatpush1.bf16.msra.mxu0 0
    %89 = vmatprep.subr.bf16.mxu0 0
    %90 = vmatpush1.bf16.msra.mxu0 0
    %91 = vmatprep.mubr.bf16.mxu0 0
    %92 = vmatmul.mubr.bf16.gmra.mrb[0].mxu0 %v53
    %v93 = vpop.f32.mrb[0].mxu0
    %v94 = vadd.f32 %v49, %v93
    %v95 = vpop.f32.mrb[0].mxu0
    %v96 = vpop.f32.mrb[0].mxu0
    %v97 = vpop.f32.mrb[0].mxu0
    %98 = vdwg.mxu0
    %v99 = vmax.f32 %v94, 0.0
    %v100 = vpack.c.bf16 %v99, %v99
    %v101 = vld [vmem:[#allocation2] sm:$0xf]
    %v102 = vld [vmem:[#allocation2 + $0x4] sm:$0xf]
    %v103 = vld [vmem:[#allocation2 + $0x8] sm:$0xf]
    %v104 = vld [vmem:[#allocation2 + $0xc] sm:$0xf]
    %v105 = vld [vmem:[#allocation2 + $0x10] sm:$0xf]
    %v106 = vld [vmem:[#allocation2 + $0x14] sm:$0xf]
    %v107 = vld [vmem:[#allocation2 + $0x18] sm:$0xf]
    %v108 = vld [vmem:[#allocation2 + $0x1c] sm:$0xf]
    %v109 = vld [vmem:[#allocation2 + $0x20] sm:$0xf]
    %v110 = vld [vmem:[#allocation2 + $0x24] sm:$0xf]
    %v111 = vld [vmem:[#allocation2 + $0x28] sm:$0xf]
    %v112 = vld [vmem:[#allocation2 + $0x2c] sm:$0xf]
    %v113 = vld [vmem:[#allocation2 + $0x30] sm:$0xf]
    %v114 = vld [vmem:[#allocation2 + $0x34] sm:$0xf]
    %v115 = vld [vmem:[#allocation2 + $0x38] sm:$0xf]
    %v116 = vld [vmem:[#allocation2 + $0x3c] sm:$0xf]
    %v117 = vld [vmem:[%s4] sm:$0x1]
    %v119 = vlaneseq
    %v120 = vshrl.u32 %v119, 7
    %v121 = vsub.s32 0, %v120
    %v122 = vrot.slane %v117, %v121
    %v140 = vunpack.c.l.b16 %v101
    %v141 = vunpack.c.l.b16 %v102
    %v142 = vunpack.c.l.b16 %v103
    %v143 = vunpack.c.l.b16 %v104
    %v144 = vunpack.c.l.b16 %v105
    %v145 = vunpack.c.l.b16 %v106
    %v146 = vunpack.c.l.b16 %v107
    %v147 = vunpack.c.l.b16 %v108
    %v148 = vunpack.c.l.b16 %v109
    %v149 = vunpack.c.l.b16 %v110
    %v150 = vunpack.c.l.b16 %v111
    %v151 = vunpack.c.l.b16 %v112
    %v152 = vunpack.c.l.b16 %v113
    %v153 = vunpack.c.l.b16 %v114
    %v154 = vunpack.c.l.b16 %v115
    %v155 = vunpack.c.l.b16 %v116
    %v156 = vpack.c.b16 %v141, %v140
    %v157 = vpack.c.b16 %v143, %v142
    %v158 = vpack.c.b16 %v145, %v144
    %v159 = vpack.c.b16 %v147, %v146
    %v160 = vpack.c.b16 %v149, %v148
    %v161 = vpack.c.b16 %v151, %v150
    %v162 = vpack.c.b16 %v153, %v152
    %v163 = vpack.c.b16 %v155, %v154
    %172 = vmatprep.subr.bf16.mxu0 0
    %173 = vmatpush1.bf16.msra.mxu0 %v156
    %174 = vmatprep.subr.bf16.mxu0 0
    %175 = vmatpush1.bf16.msra.mxu0 %v157
    %176 = vmatprep.subr.bf16.mxu0 0
    %177 = vmatpush1.bf16.msra.mxu0 %v158
    %178 = vmatprep.subr.bf16.mxu0 0
    %179 = vmatpush1.bf16.msra.mxu0 %v159
    %180 = vmatprep.subr.bf16.mxu0 0
    %181 = vmatpush1.bf16.msra.mxu0 %v160
    %182 = vmatprep.subr.bf16.mxu0 0
    %183 = vmatpush1.bf16.msra.mxu0 %v161
    %184 = vmatprep.subr.bf16.mxu0 0
    %185 = vmatpush1.bf16.msra.mxu0 %v162
    %186 = vmatprep.subr.bf16.mxu0 0
    %187 = vmatpush1.bf16.msra.mxu0 %v163
    %188 = vmatprep.subr.bf16.mxu0 0
    %189 = vmatpush1.bf16.msra.mxu0 0
    %190 = vmatprep.subr.bf16.mxu0 0
    %191 = vmatpush1.bf16.msra.mxu0 0
    %192 = vmatprep.subr.bf16.mxu0 0
    %193 = vmatpush1.bf16.msra.mxu0 0
    %194 = vmatprep.subr.bf16.mxu0 0
    %195 = vmatpush1.bf16.msra.mxu0 0
    %196 = vmatprep.subr.bf16.mxu0 0
    %197 = vmatpush1.bf16.msra.mxu0 0
    %198 = vmatprep.subr.bf16.mxu0 0
    %199 = vmatpush1.bf16.msra.mxu0 0
    %200 = vmatprep.subr.bf16.mxu0 0
    %201 = vmatpush1.bf16.msra.mxu0 0
    %202 = vmatprep.subr.bf16.mxu0 0
    %203 = vmatpush1.bf16.msra.mxu0 0
    %204 = vmatprep.mubr.bf16.mxu0 0
    %205 = vmatmul.mubr.bf16.gmra.mrb[0].mxu0 %v100
    %v206 = vpop.f32.mrb[0].mxu0
    %v207 = vadd.f32 %v122, %v206
    %v208 = vpop.f32.mrb[0].mxu0
    %v209 = vpop.f32.mrb[0].mxu0
    %v210 = vpop.f32.mrb[0].mxu0
    %211 = vdwg.mxu0
    %v212 = vmax.f32 %v207, 0.0
    %v213 = vld [vmem:[%s5] sm:$0xf]
    %v214 = vpack.c.bf16 %v212, %v212
    %v215 = vld [vmem:[%s6] sm:$0xff]
    %217 = vset.pattern.permute.xlu0 0
    %218 = vperm.xlu0 %217, %v215
    %v219 = vpop.permute.xlu0 %218
    %221 = vmatprep.subr.bf16.mxu0 0
    %222 = vmatpush1.bf16.xpose.msra.mxu0 %v214
    %223 = vmatprep.subr.bf16.mxu0 0
    %224 = vmatpush1.bf16.xpose.msra.mxu0 0
    %225 = vmatprep.subr.bf16.mxu0 0
    %226 = vmatpush1.bf16.xpose.msra.mxu0 0
    %227 = vmatprep.subr.bf16.mxu0 0
    %228 = vmatpush1.bf16.xpose.msra.mxu0 0
    %229 = vmatprep.subr.bf16.mxu0 0
    %230 = vmatpush1.bf16.xpose.msra.mxu0 0
    %231 = vmatprep.subr.bf16.mxu0 0
    %232 = vmatpush1.bf16.xpose.msra.mxu0 0
    %233 = vmatprep.subr.bf16.mxu0 0
    %234 = vmatpush1.bf16.xpose.msra.mxu0 0
    %235 = vmatprep.subr.bf16.mxu0 0
    %236 = vmatpush1.bf16.xpose.msra.mxu0 0
    %237 = vmatprep.subr.bf16.mxu0 0
    %238 = vmatpush1.bf16.xpose.msra.mxu0 0
    %239 = vmatprep.subr.bf16.mxu0 0
    %240 = vmatpush1.bf16.xpose.msra.mxu0 0
    %241 = vmatprep.subr.bf16.mxu0 0
    %242 = vmatpush1.bf16.xpose.msra.mxu0 0
    %243 = vmatprep.subr.bf16.mxu0 0
    %244 = vmatpush1.bf16.xpose.msra.mxu0 0
    %245 = vmatprep.subr.bf16.mxu0 0
    %246 = vmatpush1.bf16.xpose.msra.mxu0 0
    %247 = vmatprep.subr.bf16.mxu0 0
    %248 = vmatpush1.bf16.xpose.msra.mxu0 0
    %249 = vmatprep.subr.bf16.mxu0 0
    %250 = vmatpush1.bf16.xpose.msra.mxu0 0
    %251 = vmatprep.subr.bf16.mxu0 0
    %252 = vmatpush1.bf16.xpose.msra.mxu0 0
    %253 = vmatprep.mubr.bf16.mxu0 0
    %254 = vmatmul.mubr.bf16.gmra.mrb[0].mxu0 %v213
    %v255 = vpop.f32.mrb[0].mxu0
    %v256 = vadd.f32 %v219, %v255
    %v257 = vpop.f32.mrb[0].mxu0
    %v258 = vpop.f32.mrb[0].mxu0
    %v259 = vpop.f32.mrb[0].mxu0
    %260 = vdwg.mxu0
    %261 = vst.msk [vmem:[#allocation5] sm:$0xff] %vm51, %v256
    // Predicated region
    $region34: #{tpu_custom_call.1} parent=1 // pred_check
      _
    $region35: #{tpu_custom_call.1} parent=1 // pred_check_branch
      %263 = sbr.rel (0) target = $region37
    $region36: #{tpu_custom_call.1} parent=1 // pred_region
      %s265 = ssub.s32 128, 128
      %266 = vsyncadd [#allocation4], %s265
      %s268 = sshll.u32 [#allocation5], 4
      %s269 = int_to_ptr.vmem [resolvable:$true] %s268
      %271 = dma.vmem_to_hbm [thread:$0]  %s269, 128, %s7, [#allocation4]
    $region37: #{tpu_custom_call.1} parent=1 // pred_fallthru
      _
    // Predicated region
    $region38: #{tpu_custom_call.1} parent=1 // pred_check
      _
    $region39: #{tpu_custom_call.1} parent=1 // pred_check_branch
      %273 = sbr.rel (0) target = $region41
    $region40: #{tpu_custom_call.1} parent=1 // pred_region
      %274 = dma.done [#allocation4], 128
    $region41: #{tpu_custom_call.1} parent=1 // pred_fallthru
      _
    %275 = vsyncpa [#allocation3], 1
    %276 = vsyncpa [#allocation4], 1

</llo_original>
